<compile_context>
chip_gen: v7x
topology: tpu7x:2x2x1
jax: 0.10.0
libtpu: 0.0.40
codegen_flags: <defaults>
</compile_context>

<pallas_src>
import jax
import jax.numpy as jnp
from jax.experimental import pallas as pl
from jax.experimental.pallas import tpu as pltpu


def _model_kernel(x1_ref, x2_ref, x3_ref, x4_ref, bias_ref, out_ref,
                  acc1_ref, acc2_ref):
    k = pl.program_id(2)

    @pl.when(k == 0)
    def _():
        acc1_ref[...] = jnp.zeros_like(acc1_ref)
        acc2_ref[...] = jnp.zeros_like(acc2_ref)

    # Two MXU matmul partial products accumulated in f32.
    acc1_ref[...] += jnp.dot(x1_ref[...], x2_ref[...],
                             preferred_element_type=jnp.float32)
    acc2_ref[...] += jnp.dot(x3_ref[...], x4_ref[...],
                             preferred_element_type=jnp.float32)

    @pl.when(k == pl.num_programs(2) - 1)
    def _():
        v1 = acc1_ref[...]
        v2 = acc2_ref[...]
        v4 = bias_ref[...]                 # (1, tn) broadcast over rows
        v3 = v1 + v2
        # r1 = |v2 + (v1 + v2 + v4)| = |v1 + 2*v2 + v4|
        r1 = jnp.abs(v1 + 2.0 * v2 + v4)
        r1sq = r1 * r1
        # torch.max with three tensor args is invalid PyTorch; interpreted as
        # an elementwise 3-way maximum of the three expressions.
        r2 = jnp.maximum(jnp.maximum(v1 + v4 + r1, r1 + r1sq), r1sq - v3)
        out_ref[...] = r2.astype(out_ref.dtype)


def model_forward(x1, x2, x3, x4, x5, x6, *, tm=128, tn=128, tk=128):
    """Tiled fused forward.  x1,x2,x3,x4,x6: (N,N); x5: (1,N). Returns (N,N)."""
    n = x1.shape[0]
    tm = min(tm, n)
    tn = min(tn, n)
    tk = min(tk, n)
    assert n % tm == 0 and n % tn == 0 and n % tk == 0, "N must divide tiles"

    # Hoist the rank-1 matmul: (1,N)@(N,N) would idle >99% of the MXU and be
    # redundantly recomputed in every (i,k) step; keep it in the XLA graph.
    bias = jnp.dot(x5, x6, preferred_element_type=jnp.float32)   # (1, N)

    grid = (n // tm, n // tn, n // tk)

    flops = 2 * 2 * n * n * n + 8 * n * n
    bytes_accessed = 4 * (4 * n * n + n + n * n)
    cost = pl.CostEstimate(flops=flops, transcendentals=0,
                           bytes_accessed=bytes_accessed)

    return pl.pallas_call(
        _model_kernel,
        out_shape=jax.ShapeDtypeStruct((n, n), jnp.float32),
        grid_spec=pltpu.PrefetchScalarGridSpec(
            num_scalar_prefetch=0,
            grid=grid,
            in_specs=[
                pl.BlockSpec((tm, tk), lambda i, j, k: (i, k)),   # x1
                pl.BlockSpec((tk, tn), lambda i, j, k: (k, j)),   # x2
                pl.BlockSpec((tm, tk), lambda i, j, k: (i, k)),   # x3
                pl.BlockSpec((tk, tn), lambda i, j, k: (k, j)),   # x4
                pl.BlockSpec((1, tn),  lambda i, j, k: (0, j)),   # bias (v4)
            ],
            out_specs=pl.BlockSpec((tm, tn), lambda i, j, k: (i, j)),
            scratch_shapes=[
                pltpu.VMEM((tm, tn), jnp.float32),   # v1 accumulator
                pltpu.VMEM((tm, tn), jnp.float32),   # v2 accumulator
            ],
        ),
        compiler_params=pltpu.CompilerParams(
            dimension_semantics=("parallel", "parallel", "arbitrary"),
            vmem_limit_bytes=48 * 1024 * 1024,
        ),
        cost_estimate=cost,
    )(x1, x2, x3, x4, bias)


def reference_forward(x1, x2, x3, x4, x5, x6):
    v1 = x1 @ x2
    v2 = x3 @ x4
    v3 = v1 + v2
    v4 = x5 @ x6
    v5 = v3 + v4
    r1 = jnp.abs(v2 + v5)
    return jnp.maximum(jnp.maximum(v1 + v4 + r1, r1 + r1 * r1), r1 * r1 - v3)


if __name__ == "__main__":
    # Small but lane-dense shapes: N=256 with 128-tiles exercises a (2,2,2)
    # grid (pipelined k-reduction, parallel i/j) while keeping the run tiny.
    N = 256
    key = jax.random.PRNGKey(0)
    k1, k2, k3, k4, k5, k6 = jax.random.split(key, 6)

    # x1..x4 mimic torch.randn inputs; x5/x6 mimic the in-forward torch.rand.
    x1 = jax.random.normal(k1, (N, N), dtype=jnp.float32)
    x2 = jax.random.normal(k2, (N, N), dtype=jnp.float32)
    x3 = jax.random.normal(k3, (N, N), dtype=jnp.float32)
    x4 = jax.random.normal(k4, (N, N), dtype=jnp.float32)
    x5 = jax.random.uniform(k5, (1, N), dtype=jnp.float32)
    x6 = jax.random.uniform(k6, (N, N), dtype=jnp.float32)

    out = model_forward(x1, x2, x3, x4, x5, x6)
    out = jax.block_until_ready(out)

    ref = reference_forward(x1, x2, x3, x4, x5, x6)
    assert out.shape == (N, N)
    assert jnp.allclose(out, ref, rtol=1e-3, atol=1e-2), (
        float(jnp.max(jnp.abs(out - ref))))

    print("KERNEL_OK")
</pallas_src>

<mosaic_0001>
module attributes {stable_mosaic.version = 11 : i64} {
  func.func @_model_kernel(%arg0: i32, %arg1: i32, %arg2: i32, %arg3: memref<128x128xf32, #tpu.memory_space<vmem>>, %arg4: memref<128x128xf32, #tpu.memory_space<vmem>>, %arg5: memref<128x128xf32, #tpu.memory_space<vmem>>, %arg6: memref<128x128xf32, #tpu.memory_space<vmem>>, %arg7: memref<1x128xf32, #tpu.memory_space<vmem>>, %arg8: memref<128x128xf32, #tpu.memory_space<vmem>>, %arg9: memref<128x128xf32, #tpu.memory_space<vmem>>, %arg10: memref<128x128xf32, #tpu.memory_space<vmem>>) attributes {dimension_semantics = [#tpu.dimension_semantics<parallel>, #tpu.dimension_semantics<parallel>, #tpu.dimension_semantics<arbitrary>], iteration_bounds = array<i64: 2, 2, 2>, scalar_prefetch = 0 : i64, scratch_operands = 2 : i64, tpu.core_type = #tpu.core_type<tc>, window_params = [{transform_indices = @transform_0, window_bounds = array<i64: 128, 128>}, {transform_indices = @transform_1, window_bounds = array<i64: 128, 128>}, {transform_indices = @transform_2, window_bounds = array<i64: 128, 128>}, {transform_indices = @transform_3, window_bounds = array<i64: 128, 128>}, {transform_indices = @transform_4, window_bounds = array<i64: 1, 128>}, {transform_indices = @transform_5, window_bounds = array<i64: 128, 128>}]} {
    %c0_i32 = arith.constant 0 : i32
    %0 = arith.cmpi eq, %arg2, %c0_i32 : i32
    %1 = arith.extui %0 : i1 to i32
    %c0_i32_0 = arith.constant 0 : i32
    %2 = arith.cmpi ne, %1, %c0_i32_0 : i32
    scf.if %2 {
      %cst_18 = arith.constant 0.000000e+00 : f32
      %18 = vector.broadcast %cst_18 : f32 to vector<128x128xf32>
      %c0_19 = arith.constant 0 : index
      %c0_20 = arith.constant 0 : index
      %19 = vector.load %arg9[%c0_19, %c0_20] : memref<128x128xf32, #tpu.memory_space<vmem>>, vector<128x128xf32>
      tpu.vector_store %arg9[%c0_19, %c0_20], %18 {strides = array<i32>} : memref<128x128xf32, #tpu.memory_space<vmem>>, vector<128x128xf32>,
      %cst_21 = arith.constant 0.000000e+00 : f32
      %20 = vector.broadcast %cst_21 : f32 to vector<128x128xf32>
      %c0_22 = arith.constant 0 : index
      %c0_23 = arith.constant 0 : index
      %21 = vector.load %arg10[%c0_22, %c0_23] : memref<128x128xf32, #tpu.memory_space<vmem>>, vector<128x128xf32>
      tpu.vector_store %arg10[%c0_22, %c0_23], %20 {strides = array<i32>} : memref<128x128xf32, #tpu.memory_space<vmem>>, vector<128x128xf32>,
    } else {
    }
    %c0 = arith.constant 0 : index
    %c0_1 = arith.constant 0 : index
    %3 = vector.load %arg9[%c0, %c0_1] : memref<128x128xf32, #tpu.memory_space<vmem>>, vector<128x128xf32>
    %c0_2 = arith.constant 0 : index
    %c0_3 = arith.constant 0 : index
    %4 = vector.load %arg3[%c0_2, %c0_3] : memref<128x128xf32, #tpu.memory_space<vmem>>, vector<128x128xf32>
    %c0_4 = arith.constant 0 : index
    %c0_5 = arith.constant 0 : index
    %5 = vector.load %arg4[%c0_4, %c0_5] : memref<128x128xf32, #tpu.memory_space<vmem>>, vector<128x128xf32>
    %cst = arith.constant dense<0.000000e+00> : vector<128x128xf32>
    %6 = tpu.matmul %4, %5, %cst {dimension_numbers = #tpu.dot_dimension_numbers<[1], [0], [0], [1], [0, 0, 1, 1], [], []>} : vector<128x128xf32>, vector<128x128xf32>, vector<128x128xf32> -> vector<128x128xf32>
    %7 = arith.addf %3, %6 : vector<128x128xf32>
    %c0_6 = arith.constant 0 : index
    %c0_7 = arith.constant 0 : index
    %8 = vector.load %arg9[%c0_6, %c0_7] : memref<128x128xf32, #tpu.memory_space<vmem>>, vector<128x128xf32>
    tpu.vector_store %arg9[%c0_6, %c0_7], %7 {strides = array<i32>} : memref<128x128xf32, #tpu.memory_space<vmem>>, vector<128x128xf32>,
    %c0_8 = arith.constant 0 : index
    %c0_9 = arith.constant 0 : index
    %9 = vector.load %arg10[%c0_8, %c0_9] : memref<128x128xf32, #tpu.memory_space<vmem>>, vector<128x128xf32>
    %c0_10 = arith.constant 0 : index
    %c0_11 = arith.constant 0 : index
    %10 = vector.load %arg5[%c0_10, %c0_11] : memref<128x128xf32, #tpu.memory_space<vmem>>, vector<128x128xf32>
    %c0_12 = arith.constant 0 : index
    %c0_13 = arith.constant 0 : index
    %11 = vector.load %arg6[%c0_12, %c0_13] : memref<128x128xf32, #tpu.memory_space<vmem>>, vector<128x128xf32>
    %cst_14 = arith.constant dense<0.000000e+00> : vector<128x128xf32>
    %12 = tpu.matmul %10, %11, %cst_14 {dimension_numbers = #tpu.dot_dimension_numbers<[1], [0], [0], [1], [0, 0, 1, 1], [], []>} : vector<128x128xf32>, vector<128x128xf32>, vector<128x128xf32> -> vector<128x128xf32>
    %13 = arith.addf %9, %12 : vector<128x128xf32>
    %c0_15 = arith.constant 0 : index
    %c0_16 = arith.constant 0 : index
    %14 = vector.load %arg10[%c0_15, %c0_16] : memref<128x128xf32, #tpu.memory_space<vmem>>, vector<128x128xf32>
    tpu.vector_store %arg10[%c0_15, %c0_16], %13 {strides = array<i32>} : memref<128x128xf32, #tpu.memory_space<vmem>>, vector<128x128xf32>,
    %c1_i32 = arith.constant 1 : i32
    %15 = arith.cmpi eq, %arg2, %c1_i32 : i32
    %16 = arith.extui %15 : i1 to i32
    %c0_i32_17 = arith.constant 0 : i32
    %17 = arith.cmpi ne, %16, %c0_i32_17 : i32
    scf.if %17 {
      %c0_18 = arith.constant 0 : index
      %c0_19 = arith.constant 0 : index
      %18 = vector.load %arg9[%c0_18, %c0_19] : memref<128x128xf32, #tpu.memory_space<vmem>>, vector<128x128xf32>
      %c0_20 = arith.constant 0 : index
      %c0_21 = arith.constant 0 : index
      %19 = vector.load %arg10[%c0_20, %c0_21] : memref<128x128xf32, #tpu.memory_space<vmem>>, vector<128x128xf32>
      %c0_22 = arith.constant 0 : index
      %c0_23 = arith.constant 0 : index
      %20 = vector.load %arg7[%c0_22, %c0_23] : memref<1x128xf32, #tpu.memory_space<vmem>>, vector<1x128xf32>
      %21 = arith.addf %18, %19 : vector<128x128xf32>
      %cst_24 = arith.constant 2.000000e+00 : f32
      %22 = vector.broadcast %cst_24 : f32 to vector<128x128xf32>
      %23 = arith.mulf %22, %19 : vector<128x128xf32>
      %24 = arith.addf %18, %23 : vector<128x128xf32>
      %25 = vector.broadcast %20 : vector<1x128xf32> to vector<128x128xf32>
      %26 = arith.addf %24, %25 : vector<128x128xf32>
      %27 = math.absf %26 : vector<128x128xf32>
      %28 = arith.mulf %27, %27 : vector<128x128xf32>
      %29 = vector.broadcast %20 : vector<1x128xf32> to vector<128x128xf32>
      %30 = arith.addf %18, %29 : vector<128x128xf32>
      %31 = arith.addf %30, %27 : vector<128x128xf32>
      %32 = arith.addf %27, %28 : vector<128x128xf32>
      %33 = arith.maximumf %31, %32 : vector<128x128xf32>
      %34 = arith.subf %28, %21 : vector<128x128xf32>
      %35 = arith.maximumf %33, %34 : vector<128x128xf32>
      %c0_25 = arith.constant 0 : index
      %c0_26 = arith.constant 0 : index
      %36 = vector.load %arg8[%c0_25, %c0_26] : memref<128x128xf32, #tpu.memory_space<vmem>>, vector<128x128xf32>
      tpu.vector_store %arg8[%c0_25, %c0_26], %35 {strides = array<i32>} : memref<128x128xf32, #tpu.memory_space<vmem>>, vector<128x128xf32>,
    } else {
    }
    return
  }
  func.func @transform_0(%arg0: i32, %arg1: i32, %arg2: i32) -> (i32, i32) {
    %c0_i32 = arith.constant 0 : i32
    return %arg0, %arg2 : i32, i32
  }
  func.func @transform_1(%arg0: i32, %arg1: i32, %arg2: i32) -> (i32, i32) {
    %c0_i32 = arith.constant 0 : i32
    return %arg2, %arg1 : i32, i32
  }
  func.func @transform_2(%arg0: i32, %arg1: i32, %arg2: i32) -> (i32, i32) {
    %c0_i32 = arith.constant 0 : i32
    return %arg0, %arg2 : i32, i32
  }
  func.func @transform_3(%arg0: i32, %arg1: i32, %arg2: i32) -> (i32, i32) {
    %c0_i32 = arith.constant 0 : i32
    return %arg2, %arg1 : i32, i32
  }
  func.func @transform_4(%arg0: i32, %arg1: i32, %arg2: i32) -> (i32, i32) {
    %c0_i32 = arith.constant 0 : i32
    %c0_i32_0 = arith.constant 0 : i32
    return %c0_i32, %arg1 : i32, i32
  }
  func.func @transform_5(%arg0: i32, %arg1: i32, %arg2: i32) -> (i32, i32) {
    %c0_i32 = arith.constant 0 : i32
    return %arg0, %arg1 : i32, i32
  }
}

</mosaic_0001>

<llo_original>
// kernel: tpu_custom_call.1
$region0: #{tpu_custom_call.1}
  #allocation0 [shape = 'u32[]', space=smem, size = 0x4, offset = 0x4, fixed_abs, tag = 'smem constant byte address 0x4 - core index']
  #allocation1 [shape = 'u32[144,128]{1,0:T(1,128)}', space=vmem, size = 0x12000, scoped, tag = 'internal scratch']
  #allocation2 [shape = 'f32[128,128]{1,0:T(8,128)}', space=vmem, size = 0x10000, scoped, tag = 'scratch operand']
  #allocation3 [shape = 'f32[128,128]{1,0:T(8,128)}', space=vmem, size = 0x10000, scoped, tag = 'scratch operand']
  %s0 = inlined_call_operand.hbm [shape: f32[256,256], index: 0, kind: input, shape index: {}]
  %s1 = inlined_call_operand.hbm [shape: f32[256,256], index: 1, kind: input, shape index: {}]
  %s2 = inlined_call_operand.hbm [shape: f32[256,256], index: 2, kind: input, shape index: {}]
  %s3 = inlined_call_operand.hbm [shape: f32[256,256], index: 3, kind: input, shape index: {}]
  %s4 = inlined_call_operand.vmem [shape: f32[1,256], index: 4, kind: input, shape index: {}]
  %s5 = inlined_call_operand.hbm [shape: f32[256,256], index: 5, kind: output, shape index: {}]
  %s6 = sld [smem:[#allocation0]]
  $region77: #{tpu_custom_call.1} parent=0
    _
  %s8 = ssub.s32 1, %s6
  %s9 = scalar_select 0, %s8, %s6
  $region1: #{tpu_custom_call.1} parent=0
    #allocation4 [shape = 'u8[131072]{0}', space=vmem, size = 0x20000, scoped, tag = 'input window, operand 0']
    #allocation5 [shape = 's32[2]{0}', space=sflag, size = 0x8, scoped, tag = 'scoped memory for tpu_custom_call.1']
    #allocation6 [shape = 's32[2]{0}', space=sflag, size = 0x8, scoped, tag = 'scoped memory for tpu_custom_call.1']
    #allocation7 [shape = 'u8[131072]{0}', space=vmem, size = 0x20000, scoped, tag = 'input window, operand 1']
    #allocation8 [shape = 's32[2]{0}', space=sflag, size = 0x8, scoped, tag = 'scoped memory for tpu_custom_call.1']
    #allocation9 [shape = 'u8[131072]{0}', space=vmem, size = 0x20000, scoped, tag = 'input window, operand 2']
    #allocation10 [shape = 'u8[131072]{0}', space=vmem, size = 0x20000, scoped, tag = 'input window, operand 3']
    #allocation11 [shape = 's32[2]{0}', space=sflag, size = 0x8, scoped, tag = 'scoped memory for tpu_custom_call.1']
    #allocation12 [shape = 'u8[131072]{0}', space=vmem, size = 0x20000, scoped, tag = 'output window, operand 0']
    %10 = vsyncpa [#allocation5], 0
    %s11 = scalar_lea.sflag [#allocation5], 1
    %12 = vsyncpa %s11, 0
    %13 = vsyncpa [#allocation8], 0
    %s14 = scalar_lea.sflag [#allocation8], 1
    %15 = vsyncpa %s14, 0
    %16 = vsyncpa [#allocation11], 0
    %s17 = scalar_lea.sflag [#allocation11], 1
    %18 = vsyncpa %s17, 0
    %19 = vsyncpa [#allocation6], 0
    %s20 = scalar_lea.sflag [#allocation6], 1
    %21 = vsyncpa %s20, 0
    loop: start=0, step=1, limit=10
    $region2: #{tpu_custom_call.1} parent=1 // loop_pre_header
      _
    $region3: #{tpu_custom_call.1} parent=1 // loop_header
      %s23 = sphi 0, %s27
      %p24 = scmp.ge.s32.totalorder %s23, 10
      %s30 = sphi 0, %s49
      %s31 = sphi 0, %s45
      %s32 = sphi 0, %s41
      %s33 = sphi 0, %s30
      %s34 = sphi 0, %s31
      %s35 = sphi 0, %s32
      %s36 = sphi 0, %s33
      %s37 = sphi 0, %s34
      %s38 = sphi 0, %s35
      %s54 = sphi 0, %s56
      %s57 = sphi 0, %s54
      %s58 = sphi 0, %s57
      %s74 = sphi 0, %s58
      %s82 = sphi 0, %s84
      %s85 = sphi 0, %s82
      %s86 = sphi 0, %s85
      %s102 = sphi 0, %s86
      %s110 = sphi 0, %s112
      %s113 = sphi 0, %s110
      %s114 = sphi 0, %s113
      %s130 = sphi 0, %s114
      %s138 = sphi 0, %s140
      %s141 = sphi 0, %s138
      %s142 = sphi 0, %s141
      %s158 = sphi 0, %s142
      %s164 = sphi 0, %s166
      %s167 = sphi 0, %s164
      %s168 = sphi 0, %s167
      %s184 = sphi 0, %s168
      %s192 = sphi 0, %s194
      %s195 = sphi 0, %s192
      %s196 = sphi 0, %s195
      %s212 = sphi 0, %s196
    $region4: #{tpu_custom_call.1} parent=1 // loop_header_branch
      %26 = sbr.rel (%p24) target = $region8
    $region5: #{tpu_custom_call.1} parent=1 // loop_body
      %s28 = ssub.s32 %s23, 1
      %s29 = ssub.s32 %s23, 2
      %s39 = sadd.s32 1, %s32
      %p40 = scmp.ge.s32.totalorder %s39, 2
      %s41 = scalar_select %p40, 0, %s39
      %s42 = sadd.s32 1, %s31
      %s43 = scalar_select %p40, %s42, %s31
      %p44 = scmp.ge.s32.totalorder %s43, 2
      %s45 = scalar_select %p44, 0, %s43
      %s46 = sadd.s32 1, %s30
      %s47 = scalar_select %p44, %s46, %s30
      %p48 = scmp.ge.s32.totalorder %s47, 2
      %s49 = scalar_select %p48, 0, %s47
      %s50 = ssub.s32 %s30, %s49
      %s51 = ssub.s32 %s32, %s41
      %s52 = sor.u32 %s50, %s51
      %p53 = scmp.eq.s32.totalorder %s52, 0
      %s55 = sadd.s32 %s54, 1
      %s56 = scalar_select %p53, %s54, %s55
      %p59 = pneg %p53
      %p60 = scmp.eq.s32.totalorder %s23, 7
      %p61 = por %p59, %p60
      %p62 = scmp.ne.s32.totalorder %s54, %s57
      %p63 = scmp.eq.s32.totalorder %s23, 0
      %p64 = por %p62, %p63
      %p65 = scmp.ne.s32.totalorder %s54, %s57
      %p66 = scmp.eq.s32.totalorder %s28, 7
      %p67 = por %p65, %p66
      %p68 = scmp.ne.s32.totalorder %s57, %s58
      %p69 = scmp.eq.s32.totalorder %s28, 0
      %p70 = por %p68, %p69
      %p71 = scmp.ne.s32.totalorder %s57, %s58
      %p72 = scmp.eq.s32.totalorder %s29, 7
      %p73 = por %p71, %p72
      %p75 = scmp.ne.s32.totalorder %s58, %s74
      %p76 = scmp.eq.s32.totalorder %s29, 0
      %p77 = por %p75, %p76
      %s78 = ssub.s32 %s32, %s41
      %s79 = ssub.s32 %s31, %s45
      %s80 = sor.u32 %s78, %s79
      %p81 = scmp.eq.s32.totalorder %s80, 0
      %s83 = sadd.s32 %s82, 1
      %s84 = scalar_select %p81, %s82, %s83
      %p87 = pneg %p81
      %p88 = scmp.eq.s32.totalorder %s23, 7
      %p89 = por %p87, %p88
      %p90 = scmp.ne.s32.totalorder %s82, %s85
      %p91 = scmp.eq.s32.totalorder %s23, 0
      %p92 = por %p90, %p91
      %p93 = scmp.ne.s32.totalorder %s82, %s85
      %p94 = scmp.eq.s32.totalorder %s28, 7
      %p95 = por %p93, %p94
      %p96 = scmp.ne.s32.totalorder %s85, %s86
      %p97 = scmp.eq.s32.totalorder %s28, 0
      %p98 = por %p96, %p97
      %p99 = scmp.ne.s32.totalorder %s85, %s86
      %p100 = scmp.eq.s32.totalorder %s29, 7
      %p101 = por %p99, %p100
      %p103 = scmp.ne.s32.totalorder %s86, %s102
      %p104 = scmp.eq.s32.totalorder %s29, 0
      %p105 = por %p103, %p104
      %s106 = ssub.s32 %s30, %s49
      %s107 = ssub.s32 %s32, %s41
      %s108 = sor.u32 %s106, %s107
      %p109 = scmp.eq.s32.totalorder %s108, 0
      %s111 = sadd.s32 %s110, 1
      %s112 = scalar_select %p109, %s110, %s111
      %p115 = pneg %p109
      %p116 = scmp.eq.s32.totalorder %s23, 7
      %p117 = por %p115, %p116
      %p118 = scmp.ne.s32.totalorder %s110, %s113
      %p119 = scmp.eq.s32.totalorder %s23, 0
      %p120 = por %p118, %p119
      %p121 = scmp.ne.s32.totalorder %s110, %s113
      %p122 = scmp.eq.s32.totalorder %s28, 7
      %p123 = por %p121, %p122
      %p124 = scmp.ne.s32.totalorder %s113, %s114
      %p125 = scmp.eq.s32.totalorder %s28, 0
      %p126 = por %p124, %p125
      %p127 = scmp.ne.s32.totalorder %s113, %s114
      %p128 = scmp.eq.s32.totalorder %s29, 7
      %p129 = por %p127, %p128
      %p131 = scmp.ne.s32.totalorder %s114, %s130
      %p132 = scmp.eq.s32.totalorder %s29, 0
      %p133 = por %p131, %p132
      %s134 = ssub.s32 %s32, %s41
      %s135 = ssub.s32 %s31, %s45
      %s136 = sor.u32 %s134, %s135
      %p137 = scmp.eq.s32.totalorder %s136, 0
      %s139 = sadd.s32 %s138, 1
      %s140 = scalar_select %p137, %s138, %s139
      %p143 = pneg %p137
      %p144 = scmp.eq.s32.totalorder %s23, 7
      %p145 = por %p143, %p144
      %p146 = scmp.ne.s32.totalorder %s138, %s141
      %p147 = scmp.eq.s32.totalorder %s23, 0
      %p148 = por %p146, %p147
      %p149 = scmp.ne.s32.totalorder %s138, %s141
      %p150 = scmp.eq.s32.totalorder %s28, 7
      %p151 = por %p149, %p150
      %p152 = scmp.ne.s32.totalorder %s141, %s142
      %p153 = scmp.eq.s32.totalorder %s28, 0
      %p154 = por %p152, %p153
      %p155 = scmp.ne.s32.totalorder %s141, %s142
      %p156 = scmp.eq.s32.totalorder %s29, 7
      %p157 = por %p155, %p156
      %p159 = scmp.ne.s32.totalorder %s142, %s158
      %p160 = scmp.eq.s32.totalorder %s29, 0
      %p161 = por %p159, %p160
      %s162 = ssub.s32 %s31, %s45
      %p163 = scmp.eq.s32.totalorder %s162, 0
      %s165 = sadd.s32 %s164, 1
      %s166 = scalar_select %p163, %s164, %s165
      %p169 = pneg %p163
      %p170 = scmp.eq.s32.totalorder %s23, 7
      %p171 = por %p169, %p170
      %p172 = scmp.ne.s32.totalorder %s164, %s167
      %p173 = scmp.eq.s32.totalorder %s23, 0
      %p174 = por %p172, %p173
      %p175 = scmp.ne.s32.totalorder %s164, %s167
      %p176 = scmp.eq.s32.totalorder %s28, 7
      %p177 = por %p175, %p176
      %p178 = scmp.ne.s32.totalorder %s167, %s168
      %p179 = scmp.eq.s32.totalorder %s28, 0
      %p180 = por %p178, %p179
      %p181 = scmp.ne.s32.totalorder %s167, %s168
      %p182 = scmp.eq.s32.totalorder %s29, 7
      %p183 = por %p181, %p182
      %p185 = scmp.ne.s32.totalorder %s168, %s184
      %p186 = scmp.eq.s32.totalorder %s29, 0
      %p187 = por %p185, %p186
      %s188 = ssub.s32 %s30, %s49
      %s189 = ssub.s32 %s31, %s45
      %s190 = sor.u32 %s188, %s189
      %p191 = scmp.eq.s32.totalorder %s190, 0
      %s193 = sadd.s32 %s192, 1
      %s194 = scalar_select %p191, %s192, %s193
      %p197 = pneg %p191
      %p198 = scmp.eq.s32.totalorder %s23, 7
      %p199 = por %p197, %p198
      %p200 = scmp.ne.s32.totalorder %s192, %s195
      %p201 = scmp.eq.s32.totalorder %s23, 0
      %p202 = por %p200, %p201
      %p203 = scmp.ne.s32.totalorder %s192, %s195
      %p204 = scmp.eq.s32.totalorder %s28, 7
      %p205 = por %p203, %p204
      %p206 = scmp.ne.s32.totalorder %s195, %s196
      %p207 = scmp.eq.s32.totalorder %s28, 0
      %p208 = por %p206, %p207
      %p209 = scmp.ne.s32.totalorder %s195, %s196
      %p210 = scmp.eq.s32.totalorder %s29, 7
      %p211 = por %p209, %p210
      %p213 = scmp.ne.s32.totalorder %s196, %s212
      %p214 = scmp.eq.s32.totalorder %s29, 0
      %p215 = por %p213, %p214
      %p216 = scmp.le.s32.totalorder 1, %s23
      %p217 = scmp.lt.s32.totalorder %s23, 9
      %p218 = pnand %p216, %p217
      %p219 = pneg %p218
      // Predicated region
      $region9: #{tpu_custom_call.1} parent=5 // pred_check
        _
      $region10: #{tpu_custom_call.1} parent=5 // pred_check_branch
        %221 = sbr.rel (%p218) target = $region12
      $region11: #{tpu_custom_call.1} parent=5 // pred_region
        %s222 = ssub.s32 %s23, 1
      $region12: #{tpu_custom_call.1} parent=5 // pred_fallthru
        _
      %p223 = scmp.lt.s32.totalorder %s23, 8
      // Predicated region
      $region13: #{tpu_custom_call.1} parent=5 // pred_check
        %p224 = pneg %p223
      $region14: #{tpu_custom_call.1} parent=5 // pred_check_branch
        %226 = sbr.rel (%p224) target = $region16
      $region15: #{tpu_custom_call.1} parent=5 // pred_region
        // Predicated region
        $region17: #{tpu_custom_call.1} parent=15 // pred_check
          %p227 = pneg %p64
        $region18: #{tpu_custom_call.1} parent=15 // pred_check_branch
          %229 = sbr.rel (%p227) target = $region20
        $region19: #{tpu_custom_call.1} parent=15 // pred_region
          %s230 = sand.u32 %s54, 1
          %s231 = scalar_lea.sflag [#allocation5], %s230
          %s232 = sand.u32 %s54, 1
          %s233 = smul.addr %s232, 128
          %s234 = scalar_lea.vmem [#allocation4], %s233
          %s235 = smul.u32 16, %s30
          %s237 = ssub.s32 2048, 2048
          %238 = vsyncadd %s231, %s237
          %s239 = smul.addr %s235, 2
          %s240 = sadd.s32 %s32, %s239
          %s241 = smul.addr %s240, 128
          %s242 = scalar_lea.hbm %s0, %s241
          %s243 = sshll.u32 %s234, 4
          %s244 = int_to_ptr.vmem [resolvable:$true] %s243
          %249 = dma.hbm_to_vmem [thread:$0]  %s242, 2048, %s244, %s231, 256, 128, 8
        $region20: #{tpu_custom_call.1} parent=15 // pred_fallthru
          _
        // Predicated region
        $region21: #{tpu_custom_call.1} parent=15 // pred_check
          %p250 = pneg %p92
        $region22: #{tpu_custom_call.1} parent=15 // pred_check_branch
          %252 = sbr.rel (%p250) target = $region24
        $region23: #{tpu_custom_call.1} parent=15 // pred_region
          %s253 = sand.u32 %s23, 1
          %s254 = scalar_lea.sflag [#allocation8], %s253
          %s255 = sand.u32 %s82, 1
          %s256 = smul.addr %s255, 128
          %s257 = scalar_lea.vmem [#allocation7], %s256
          %s258 = smul.u32 16, %s32
          %s260 = ssub.s32 2048, 2048
          %261 = vsyncadd %s254, %s260
          %s262 = smul.addr %s258, 2
          %s263 = sadd.s32 %s31, %s262
          %s264 = smul.addr %s263, 128
          %s265 = scalar_lea.hbm %s1, %s264
          %s266 = sshll.u32 %s257, 4
          %s267 = int_to_ptr.vmem [resolvable:$true] %s266
          %272 = dma.hbm_to_vmem [thread:$0]  %s265, 2048, %s267, %s254, 256, 128, 8
        $region24: #{tpu_custom_call.1} parent=15 // pred_fallthru
          _
        // Predicated region
        $region25: #{tpu_custom_call.1} parent=15 // pred_check
          %p273 = pneg %p120
        $region26: #{tpu_custom_call.1} parent=15 // pred_check_branch
          %275 = sbr.rel (%p273) target = $region28
        $region27: #{tpu_custom_call.1} parent=15 // pred_region
          %s276 = sand.u32 %s23, 1
          %s277 = scalar_lea.sflag [#allocation8], %s276
          %s278 = sand.u32 %s110, 1
          %s279 = smul.addr %s278, 128
          %s280 = scalar_lea.vmem [#allocation9], %s279
          %s281 = smul.u32 16, %s30
          %s283 = ssub.s32 2048, 2048
          %284 = vsyncadd %s277, %s283
          %s285 = smul.addr %s281, 2
          %s286 = sadd.s32 %s32, %s285
          %s287 = smul.addr %s286, 128
          %s288 = scalar_lea.hbm %s2, %s287
          %s289 = sshll.u32 %s280, 4
          %s290 = int_to_ptr.vmem [resolvable:$true] %s289
          %295 = dma.hbm_to_vmem [thread:$0]  %s288, 2048, %s290, %s277, 256, 128, 8
        $region28: #{tpu_custom_call.1} parent=15 // pred_fallthru
          _
        // Predicated region
        $region29: #{tpu_custom_call.1} parent=15 // pred_check
          %p296 = pneg %p148
        $region30: #{tpu_custom_call.1} parent=15 // pred_check_branch
          %298 = sbr.rel (%p296) target = $region32
        $region31: #{tpu_custom_call.1} parent=15 // pred_region
          %s299 = sand.u32 %s138, 1
          %s300 = scalar_lea.sflag [#allocation11], %s299
          %s301 = sand.u32 %s138, 1
          %s302 = smul.addr %s301, 128
          %s303 = scalar_lea.vmem [#allocation10], %s302
          %s304 = smul.u32 16, %s32
          %s306 = ssub.s32 2048, 2048
          %307 = vsyncadd %s300, %s306
          %s308 = smul.addr %s304, 2
          %s309 = sadd.s32 %s31, %s308
          %s310 = smul.addr %s309, 128
          %s311 = scalar_lea.hbm %s3, %s310
          %s312 = sshll.u32 %s303, 4
          %s313 = int_to_ptr.vmem [resolvable:$true] %s312
          %318 = dma.hbm_to_vmem [thread:$0]  %s311, 2048, %s313, %s300, 256, 128, 8
        $region32: #{tpu_custom_call.1} parent=15 // pred_fallthru
          _
        // Predicated region
        $region33: #{tpu_custom_call.1} parent=15 // pred_check
          %p319 = pneg %p174
        $region34: #{tpu_custom_call.1} parent=15 // pred_check_branch
          %321 = sbr.rel (%p319) target = $region36
        $region35: #{tpu_custom_call.1} parent=15 // pred_region
          %p322 = scmp.lt.s32.totalorder %s31, 1
          %s323 = scalar_select %p322, %s31, 1
          %s324 = scalar_lea.vmem %s4, %s323
        $region36: #{tpu_custom_call.1} parent=15 // pred_fallthru
          _
      $region16: #{tpu_custom_call.1} parent=5 // pred_fallthru
        _
      %p325 = scmp.le.s32.totalorder 1, %s23
      %p326 = scmp.lt.s32.totalorder %s23, 9
      %p327 = pnand %p325, %p326
      %p328 = pneg %p327
      // Predicated region
      $region37: #{tpu_custom_call.1} parent=5 // pred_check
        _
      $region38: #{tpu_custom_call.1} parent=5 // pred_check_branch
        %330 = sbr.rel (%p327) target = $region40
      $region39: #{tpu_custom_call.1} parent=5 // pred_region
        %s331 = ssub.s32 %s23, 1
        %s332 = sand.u32 %s57, 1
        %s333 = scalar_lea.sflag [#allocation5], %s332
        %s334 = sand.u32 %s57, 1
        %s335 = smul.addr %s334, 128
        %s336 = scalar_lea.vmem [#allocation4], %s335
        // Predicated region
        $region41: #{tpu_custom_call.1} parent=39 // pred_check
          %p337 = pneg %p70
        $region42: #{tpu_custom_call.1} parent=39 // pred_check_branch
          %339 = sbr.rel (%p337) target = $region44
        $region43: #{tpu_custom_call.1} parent=39 // pred_region
          %340 = dma.done %s333, 2048
        $region44: #{tpu_custom_call.1} parent=39 // pred_fallthru
          _
        %s341 = sand.u32 %s28, 1
        %s342 = scalar_lea.sflag [#allocation8], %s341
        %s343 = sand.u32 %s85, 1
        %s344 = smul.addr %s343, 128
        %s345 = scalar_lea.vmem [#allocation7], %s344
        // Predicated region
        $region45: #{tpu_custom_call.1} parent=39 // pred_check
          %p346 = pneg %p98
        $region46: #{tpu_custom_call.1} parent=39 // pred_check_branch
          %348 = sbr.rel (%p346) target = $region48
        $region47: #{tpu_custom_call.1} parent=39 // pred_region
          %349 = dma.done %s342, 2048
        $region48: #{tpu_custom_call.1} parent=39 // pred_fallthru
          _
        %s350 = sand.u32 %s28, 1
        %s351 = scalar_lea.sflag [#allocation8], %s350
        %s352 = sand.u32 %s113, 1
        %s353 = smul.addr %s352, 128
        %s354 = scalar_lea.vmem [#allocation9], %s353
        // Predicated region
        $region49: #{tpu_custom_call.1} parent=39 // pred_check
          %p355 = pneg %p126
        $region50: #{tpu_custom_call.1} parent=39 // pred_check_branch
          %357 = sbr.rel (%p355) target = $region52
        $region51: #{tpu_custom_call.1} parent=39 // pred_region
          %358 = dma.done %s351, 2048
        $region52: #{tpu_custom_call.1} parent=39 // pred_fallthru
          _
        %s359 = sand.u32 %s141, 1
        %s360 = scalar_lea.sflag [#allocation11], %s359
        %s361 = sand.u32 %s141, 1
        %s362 = smul.addr %s361, 128
        %s363 = scalar_lea.vmem [#allocation10], %s362
        // Predicated region
        $region53: #{tpu_custom_call.1} parent=39 // pred_check
          %p364 = pneg %p154
        $region54: #{tpu_custom_call.1} parent=39 // pred_check_branch
          %366 = sbr.rel (%p364) target = $region56
        $region55: #{tpu_custom_call.1} parent=39 // pred_region
          %367 = dma.done %s360, 2048
        $region56: #{tpu_custom_call.1} parent=39 // pred_fallthru
          _
        %s368 = sand.u32 %s57, 1
        %s369 = scalar_lea.sflag [#allocation5], %s368
        %s370 = sand.u32 %s57, 1
        %s371 = smul.addr %s370, 128
        %s372 = scalar_lea.vmem [#allocation4], %s371
        %p373 = pneg %p70
        %p374 = pneg %p67
        %s375 = sand.u32 %s28, 1
        %s376 = scalar_lea.sflag [#allocation8], %s375
        %s377 = sand.u32 %s85, 1
        %s378 = smul.addr %s377, 128
        %s379 = scalar_lea.vmem [#allocation7], %s378
        %p380 = pneg %p98
        %p381 = pneg %p95
        %s382 = sand.u32 %s28, 1
        %s383 = scalar_lea.sflag [#allocation8], %s382
        %s384 = sand.u32 %s113, 1
        %s385 = smul.addr %s384, 128
        %s386 = scalar_lea.vmem [#allocation9], %s385
        %p387 = pneg %p126
        %p388 = pneg %p123
        %s389 = sand.u32 %s141, 1
        %s390 = scalar_lea.sflag [#allocation11], %s389
        %s391 = sand.u32 %s141, 1
        %s392 = smul.addr %s391, 128
        %s393 = scalar_lea.vmem [#allocation10], %s392
        %p394 = pneg %p154
        %p395 = pneg %p151
        %p396 = scmp.lt.s32.totalorder %s34, 1
        %s397 = scalar_select %p396, %s34, 1
        %s398 = scalar_lea.vmem %s4, %s397
        %p399 = pneg %p180
        %p400 = pneg %p177
        %p401 = pneg %p208
        %p402 = pneg %p205
        %s403 = sand.u32 %s195, 1
        %s404 = scalar_lea.sflag [#allocation6], %s403
        %s405 = sand.u32 %s195, 1
        %s406 = smul.addr %s405, 128
        %s407 = scalar_lea.vmem [#allocation12], %s406
        %s408 = smul.u32 16, %s33
        %s409 = smul.u32 16, %s35
        %s410 = smul.u32 16, %s33
        %s411 = smul.u32 16, %s35
        %p412 = scmp.lt.s32.totalorder %s34, 1
        %s413 = scalar_select %p412, %s34, 1
        %s414 = scalar_lea.vmem %s4, %s413
        %s415 = smul.u32 16, %s33
        %p416 = scmp.eq.s32.totalorder %s35, 0
        // Predicated region
        $region57: #{tpu_custom_call.1} parent=39 // pred_check
          %p417 = pneg %p416
        $region58: #{tpu_custom_call.1} parent=39 // pred_check_branch
          %419 = sbr.rel (%p417) target = $region60
        $region59: #{tpu_custom_call.1} parent=39 // pred_region
          %420 = vst [vmem:[#allocation2] sm:$0xff] 0.0
          %421 = vst [vmem:[#allocation2 + $0x8] sm:$0xff] 0.0
          %422 = vst [vmem:[#allocation2 + $0x10] sm:$0xff] 0.0
          %423 = vst [vmem:[#allocation2 + $0x18] sm:$0xff] 0.0
          %424 = vst [vmem:[#allocation2 + $0x20] sm:$0xff] 0.0
          %425 = vst [vmem:[#allocation2 + $0x28] sm:$0xff] 0.0
          %426 = vst [vmem:[#allocation2 + $0x30] sm:$0xff] 0.0
          %427 = vst [vmem:[#allocation2 + $0x38] sm:$0xff] 0.0
          %428 = vst [vmem:[#allocation2 + $0x40] sm:$0xff] 0.0
          %429 = vst [vmem:[#allocation2 + $0x48] sm:$0xff] 0.0
          %430 = vst [vmem:[#allocation2 + $0x50] sm:$0xff] 0.0
          %431 = vst [vmem:[#allocation2 + $0x58] sm:$0xff] 0.0
          %432 = vst [vmem:[#allocation2 + $0x60] sm:$0xff] 0.0
          %433 = vst [vmem:[#allocation2 + $0x68] sm:$0xff] 0.0
          %434 = vst [vmem:[#allocation2 + $0x70] sm:$0xff] 0.0
          %435 = vst [vmem:[#allocation2 + $0x78] sm:$0xff] 0.0
          %436 = vst [vmem:[#allocation3] sm:$0xff] 0.0
          %437 = vst [vmem:[#allocation3 + $0x8] sm:$0xff] 0.0
          %438 = vst [vmem:[#allocation3 + $0x10] sm:$0xff] 0.0
          %439 = vst [vmem:[#allocation3 + $0x18] sm:$0xff] 0.0
          %440 = vst [vmem:[#allocation3 + $0x20] sm:$0xff] 0.0
          %441 = vst [vmem:[#allocation3 + $0x28] sm:$0xff] 0.0
          %442 = vst [vmem:[#allocation3 + $0x30] sm:$0xff] 0.0
          %443 = vst [vmem:[#allocation3 + $0x38] sm:$0xff] 0.0
          %444 = vst [vmem:[#allocation3 + $0x40] sm:$0xff] 0.0
          %445 = vst [vmem:[#allocation3 + $0x48] sm:$0xff] 0.0
          %446 = vst [vmem:[#allocation3 + $0x50] sm:$0xff] 0.0
          %447 = vst [vmem:[#allocation3 + $0x58] sm:$0xff] 0.0
          %448 = vst [vmem:[#allocation3 + $0x60] sm:$0xff] 0.0
          %449 = vst [vmem:[#allocation3 + $0x68] sm:$0xff] 0.0
          %450 = vst [vmem:[#allocation3 + $0x70] sm:$0xff] 0.0
          %451 = vst [vmem:[#allocation3 + $0x78] sm:$0xff] 0.0
        $region60: #{tpu_custom_call.1} parent=39 // pred_fallthru
          _
        %v452 = vld [vmem:[#allocation2] sm:$0xff]
        %v453 = vld [vmem:[#allocation2 + $0x8] sm:$0xff]
        %v454 = vld [vmem:[#allocation2 + $0x10] sm:$0xff]
        %v455 = vld [vmem:[#allocation2 + $0x18] sm:$0xff]
        %v456 = vld [vmem:[#allocation2 + $0x20] sm:$0xff]
        %v457 = vld [vmem:[#allocation2 + $0x28] sm:$0xff]
        %v458 = vld [vmem:[#allocation2 + $0x30] sm:$0xff]
        %v459 = vld [vmem:[#allocation2 + $0x38] sm:$0xff]
        %v460 = vld [vmem:[#allocation2 + $0x40] sm:$0xff]
        %v461 = vld [vmem:[#allocation2 + $0x48] sm:$0xff]
        %v462 = vld [vmem:[#allocation2 + $0x50] sm:$0xff]
        %v463 = vld [vmem:[#allocation2 + $0x58] sm:$0xff]
        %v464 = vld [vmem:[#allocation2 + $0x60] sm:$0xff]
        %v465 = vld [vmem:[#allocation2 + $0x68] sm:$0xff]
        %v466 = vld [vmem:[#allocation2 + $0x70] sm:$0xff]
        %v467 = vld [vmem:[#allocation2 + $0x78] sm:$0xff]
        %v468 = vld [vmem:[%s336] sm:$0xff]
        %v469 = vld [vmem:[%s336 + $0x8] sm:$0xff]
        %v470 = vld [vmem:[%s336 + $0x10] sm:$0xff]
        %v471 = vld [vmem:[%s336 + $0x18] sm:$0xff]
        %v472 = vld [vmem:[%s336 + $0x20] sm:$0xff]
        %v473 = vld [vmem:[%s336 + $0x28] sm:$0xff]
        %v474 = vld [vmem:[%s336 + $0x30] sm:$0xff]
        %v475 = vld [vmem:[%s336 + $0x38] sm:$0xff]
        %v476 = vld [vmem:[%s336 + $0x40] sm:$0xff]
        %v477 = vld [vmem:[%s336 + $0x48] sm:$0xff]
        %v478 = vld [vmem:[%s336 + $0x50] sm:$0xff]
        %v479 = vld [vmem:[%s336 + $0x58] sm:$0xff]
        %v480 = vld [vmem:[%s336 + $0x60] sm:$0xff]
        %v481 = vld [vmem:[%s336 + $0x68] sm:$0xff]
        %v482 = vld [vmem:[%s336 + $0x70] sm:$0xff]
        %v483 = vld [vmem:[%s336 + $0x78] sm:$0xff]
        %v484 = vld [vmem:[%s345] sm:$0xff]
        %v485 = vld [vmem:[%s345 + $0x8] sm:$0xff]
        %v486 = vld [vmem:[%s345 + $0x10] sm:$0xff]
        %v487 = vld [vmem:[%s345 + $0x18] sm:$0xff]
        %v488 = vld [vmem:[%s345 + $0x20] sm:$0xff]
        %v489 = vld [vmem:[%s345 + $0x28] sm:$0xff]
        %v490 = vld [vmem:[%s345 + $0x30] sm:$0xff]
        %v491 = vld [vmem:[%s345 + $0x38] sm:$0xff]
        %v492 = vld [vmem:[%s345 + $0x40] sm:$0xff]
        %v493 = vld [vmem:[%s345 + $0x48] sm:$0xff]
        %v494 = vld [vmem:[%s345 + $0x50] sm:$0xff]
        %v495 = vld [vmem:[%s345 + $0x58] sm:$0xff]
        %v496 = vld [vmem:[%s345 + $0x60] sm:$0xff]
        %v497 = vld [vmem:[%s345 + $0x68] sm:$0xff]
        %v498 = vld [vmem:[%s345 + $0x70] sm:$0xff]
        %v499 = vld [vmem:[%s345 + $0x78] sm:$0xff]
        %500 = vmatprep.subr.mxu0 0.0
        %501 = vmatpush1.msra.mxu0 %v484
        %502 = vmatprep.subr.mxu0 0.0
        %503 = vmatpush1.msra.mxu0 %v485
        %504 = vmatprep.subr.mxu0 0.0
        %505 = vmatpush1.msra.mxu0 %v486
        %506 = vmatprep.subr.mxu0 0.0
        %507 = vmatpush1.msra.mxu0 %v487
        %508 = vmatprep.subr.mxu0 0.0
        %509 = vmatpush1.msra.mxu0 %v488
        %510 = vmatprep.subr.mxu0 0.0
        %511 = vmatpush1.msra.mxu0 %v489
        %512 = vmatprep.subr.mxu0 0.0
        %513 = vmatpush1.msra.mxu0 %v490
        %514 = vmatprep.subr.mxu0 0.0
        %515 = vmatpush1.msra.mxu0 %v491
        %516 = vmatprep.subr.mxu0 0.0
        %517 = vmatpush1.msra.mxu0 %v492
        %518 = vmatprep.subr.mxu0 0.0
        %519 = vmatpush1.msra.mxu0 %v493
        %520 = vmatprep.subr.mxu0 0.0
        %521 = vmatpush1.msra.mxu0 %v494
        %522 = vmatprep.subr.mxu0 0.0
        %523 = vmatpush1.msra.mxu0 %v495
        %524 = vmatprep.subr.mxu0 0.0
        %525 = vmatpush1.msra.mxu0 %v496
        %526 = vmatprep.subr.mxu0 0.0
        %527 = vmatpush1.msra.mxu0 %v497
        %528 = vmatprep.subr.mxu0 0.0
        %529 = vmatpush1.msra.mxu0 %v498
        %530 = vmatprep.subr.mxu0 0.0
        %531 = vmatpush1.msra.mxu0 %v499
        %532 = vmatprep.subr.mxu0 0.0
        %533 = vmatpush1.msra.mxu0 0.0
        %534 = vmatprep.subr.mxu0 0.0
        %535 = vmatpush1.msra.mxu0 0.0
        %536 = vmatprep.subr.mxu0 0.0
        %537 = vmatpush1.msra.mxu0 0.0
        %538 = vmatprep.subr.mxu0 0.0
        %539 = vmatpush1.msra.mxu0 0.0
        %540 = vmatprep.subr.mxu0 0.0
        %541 = vmatpush1.msra.mxu0 0.0
        %542 = vmatprep.subr.mxu0 0.0
        %543 = vmatpush1.msra.mxu0 0.0
        %544 = vmatprep.subr.mxu0 0.0
        %545 = vmatpush1.msra.mxu0 0.0
        %546 = vmatprep.subr.mxu0 0.0
        %547 = vmatpush1.msra.mxu0 0.0
        %548 = vmatprep.subr.mxu0 0.0
        %549 = vmatpush1.msra.mxu0 0.0
        %550 = vmatprep.subr.mxu0 0.0
        %551 = vmatpush1.msra.mxu0 0.0
        %552 = vmatprep.subr.mxu0 0.0
        %553 = vmatpush1.msra.mxu0 0.0
        %554 = vmatprep.subr.mxu0 0.0
        %555 = vmatpush1.msra.mxu0 0.0
        %556 = vmatprep.subr.mxu0 0.0
        %557 = vmatpush1.msra.mxu0 0.0
        %558 = vmatprep.subr.mxu0 0.0
        %559 = vmatpush1.msra.mxu0 0.0
        %560 = vmatprep.subr.mxu0 0.0
        %561 = vmatpush1.msra.mxu0 0.0
        %562 = vmatprep.subr.mxu0 0.0
        %563 = vmatpush1.msra.mxu0 0.0
        %564 = vmatprep.mubr.f32.mxu0 0.0
        %565 = vmatmul.mubr.f32.gmra.mrb[0].mxu0 %v468
        %v566 = vpop.f32.mrb[0].mxu0
        %v567 = vadd.f32 0.0, %v566
        %v568 = vpop.f32.mrb[0].mxu0
        %569 = vmatprep.mubr.f32.mxu0 0.0
        %570 = vmatmul.mubr.f32.gmra.mrb[0].mxu0 %v469
        %v571 = vpop.f32.mrb[0].mxu0
        %v572 = vadd.f32 0.0, %v571
        %v573 = vpop.f32.mrb[0].mxu0
        %574 = vmatprep.mubr.f32.mxu0 0.0
        %575 = vmatmul.mubr.f32.gmra.mrb[0].mxu0 %v470
        %v576 = vpop.f32.mrb[0].mxu0
        %v577 = vadd.f32 0.0, %v576
        %v578 = vpop.f32.mrb[0].mxu0
        %579 = vmatprep.mubr.f32.mxu0 0.0
        %580 = vmatmul.mubr.f32.gmra.mrb[0].mxu0 %v471
        %v581 = vpop.f32.mrb[0].mxu0
        %v582 = vadd.f32 0.0, %v581
        %v583 = vpop.f32.mrb[0].mxu0
        %584 = vmatprep.mubr.f32.mxu0 0.0
        %585 = vmatmul.mubr.f32.gmra.mrb[0].mxu0 %v472
        %v586 = vpop.f32.mrb[0].mxu0
        %v587 = vadd.f32 0.0, %v586
        %v588 = vpop.f32.mrb[0].mxu0
        %589 = vmatprep.mubr.f32.mxu0 0.0
        %590 = vmatmul.mubr.f32.gmra.mrb[0].mxu0 %v473
        %v591 = vpop.f32.mrb[0].mxu0
        %v592 = vadd.f32 0.0, %v591
        %v593 = vpop.f32.mrb[0].mxu0
        %594 = vmatprep.mubr.f32.mxu0 0.0
        %595 = vmatmul.mubr.f32.gmra.mrb[0].mxu0 %v474
        %v596 = vpop.f32.mrb[0].mxu0
        %v597 = vadd.f32 0.0, %v596
        %v598 = vpop.f32.mrb[0].mxu0
        %599 = vmatprep.mubr.f32.mxu0 0.0
        %600 = vmatmul.mubr.f32.gmra.mrb[0].mxu0 %v475
        %v601 = vpop.f32.mrb[0].mxu0
        %v602 = vadd.f32 0.0, %v601
        %v603 = vpop.f32.mrb[0].mxu0
        %604 = vmatprep.mubr.f32.mxu0 0.0
        %605 = vmatmul.mubr.f32.gmra.mrb[0].mxu0 %v476
        %v606 = vpop.f32.mrb[0].mxu0
        %v607 = vadd.f32 0.0, %v606
        %v608 = vpop.f32.mrb[0].mxu0
        %609 = vmatprep.mubr.f32.mxu0 0.0
        %610 = vmatmul.mubr.f32.gmra.mrb[0].mxu0 %v477
        %v611 = vpop.f32.mrb[0].mxu0
        %v612 = vadd.f32 0.0, %v611
        %v613 = vpop.f32.mrb[0].mxu0
        %614 = vmatprep.mubr.f32.mxu0 0.0
        %615 = vmatmul.mubr.f32.gmra.mrb[0].mxu0 %v478
        %v616 = vpop.f32.mrb[0].mxu0
        %v617 = vadd.f32 0.0, %v616
        %v618 = vpop.f32.mrb[0].mxu0
        %619 = vmatprep.mubr.f32.mxu0 0.0
        %620 = vmatmul.mubr.f32.gmra.mrb[0].mxu0 %v479
        %v621 = vpop.f32.mrb[0].mxu0
        %v622 = vadd.f32 0.0, %v621
        %v623 = vpop.f32.mrb[0].mxu0
        %624 = vmatprep.mubr.f32.mxu0 0.0
        %625 = vmatmul.mubr.f32.gmra.mrb[0].mxu0 %v480
        %v626 = vpop.f32.mrb[0].mxu0
        %v627 = vadd.f32 0.0, %v626
        %v628 = vpop.f32.mrb[0].mxu0
        %629 = vmatprep.mubr.f32.mxu0 0.0
        %630 = vmatmul.mubr.f32.gmra.mrb[0].mxu0 %v481
        %v631 = vpop.f32.mrb[0].mxu0
        %v632 = vadd.f32 0.0, %v631
        %v633 = vpop.f32.mrb[0].mxu0
        %634 = vmatprep.mubr.f32.mxu0 0.0
        %635 = vmatmul.mubr.f32.gmra.mrb[0].mxu0 %v482
        %v636 = vpop.f32.mrb[0].mxu0
        %v637 = vadd.f32 0.0, %v636
        %v638 = vpop.f32.mrb[0].mxu0
        %639 = vmatprep.mubr.f32.mxu0 0.0
        %640 = vmatmul.mubr.f32.gmra.mrb[0].mxu0 %v483
        %v641 = vpop.f32.mrb[0].mxu0
        %v642 = vadd.f32 0.0, %v641
        %v643 = vpop.f32.mrb[0].mxu0
        %644 = vdwg.mxu0
        %v645 = vadd.f32 %v452, %v567
        %v646 = vadd.f32 %v453, %v572
        %v647 = vadd.f32 %v454, %v577
        %v648 = vadd.f32 %v455, %v582
        %v649 = vadd.f32 %v456, %v587
        %v650 = vadd.f32 %v457, %v592
        %v651 = vadd.f32 %v458, %v597
        %v652 = vadd.f32 %v459, %v602
        %v653 = vadd.f32 %v460, %v607
        %v654 = vadd.f32 %v461, %v612
        %v655 = vadd.f32 %v462, %v617
        %v656 = vadd.f32 %v463, %v622
        %v657 = vadd.f32 %v464, %v627
        %v658 = vadd.f32 %v465, %v632
        %v659 = vadd.f32 %v466, %v637
        %v660 = vadd.f32 %v467, %v642
        %661 = vst [vmem:[#allocation2] sm:$0xff] %v645
        %662 = vst [vmem:[#allocation2 + $0x8] sm:$0xff] %v646
        %663 = vst [vmem:[#allocation2 + $0x10] sm:$0xff] %v647
        %664 = vst [vmem:[#allocation2 + $0x18] sm:$0xff] %v648
        %665 = vst [vmem:[#allocation2 + $0x20] sm:$0xff] %v649
        %666 = vst [vmem:[#allocation2 + $0x28] sm:$0xff] %v650
        %667 = vst [vmem:[#allocation2 + $0x30] sm:$0xff] %v651
        %668 = vst [vmem:[#allocation2 + $0x38] sm:$0xff] %v652
        %669 = vst [vmem:[#allocation2 + $0x40] sm:$0xff] %v653
        %670 = vst [vmem:[#allocation2 + $0x48] sm:$0xff] %v654
        %671 = vst [vmem:[#allocation2 + $0x50] sm:$0xff] %v655
        %672 = vst [vmem:[#allocation2 + $0x58] sm:$0xff] %v656
        %673 = vst [vmem:[#allocation2 + $0x60] sm:$0xff] %v657
        %674 = vst [vmem:[#allocation2 + $0x68] sm:$0xff] %v658
        %675 = vst [vmem:[#allocation2 + $0x70] sm:$0xff] %v659
        %676 = vst [vmem:[#allocation2 + $0x78] sm:$0xff] %v660
        %v677 = vld [vmem:[#allocation3] sm:$0xff]
        %v678 = vld [vmem:[#allocation3 + $0x8] sm:$0xff]
        %v679 = vld [vmem:[#allocation3 + $0x10] sm:$0xff]
        %v680 = vld [vmem:[#allocation3 + $0x18] sm:$0xff]
        %v681 = vld [vmem:[#allocation3 + $0x20] sm:$0xff]
        %v682 = vld [vmem:[#allocation3 + $0x28] sm:$0xff]
        %v683 = vld [vmem:[#allocation3 + $0x30] sm:$0xff]
        %v684 = vld [vmem:[#allocation3 + $0x38] sm:$0xff]
        %v685 = vld [vmem:[#allocation3 + $0x40] sm:$0xff]
        %v686 = vld [vmem:[#allocation3 + $0x48] sm:$0xff]
        %v687 = vld [vmem:[#allocation3 + $0x50] sm:$0xff]
        %v688 = vld [vmem:[#allocation3 + $0x58] sm:$0xff]
        %v689 = vld [vmem:[#allocation3 + $0x60] sm:$0xff]
        %v690 = vld [vmem:[#allocation3 + $0x68] sm:$0xff]
        %v691 = vld [vmem:[#allocation3 + $0x70] sm:$0xff]
        %v692 = vld [vmem:[#allocation3 + $0x78] sm:$0xff]
        %v693 = vld [vmem:[%s354] sm:$0xff]
        %v694 = vld [vmem:[%s354 + $0x8] sm:$0xff]
        %v695 = vld [vmem:[%s354 + $0x10] sm:$0xff]
        %v696 = vld [vmem:[%s354 + $0x18] sm:$0xff]
        %v697 = vld [vmem:[%s354 + $0x20] sm:$0xff]
        %v698 = vld [vmem:[%s354 + $0x28] sm:$0xff]
        %v699 = vld [vmem:[%s354 + $0x30] sm:$0xff]
        %v700 = vld [vmem:[%s354 + $0x38] sm:$0xff]
        %v701 = vld [vmem:[%s354 + $0x40] sm:$0xff]
        %v702 = vld [vmem:[%s354 + $0x48] sm:$0xff]
        %v703 = vld [vmem:[%s354 + $0x50] sm:$0xff]
        %v704 = vld [vmem:[%s354 + $0x58] sm:$0xff]
        %v705 = vld [vmem:[%s354 + $0x60] sm:$0xff]
        %v706 = vld [vmem:[%s354 + $0x68] sm:$0xff]
        %v707 = vld [vmem:[%s354 + $0x70] sm:$0xff]
        %v708 = vld [vmem:[%s354 + $0x78] sm:$0xff]
        %v709 = vld [vmem:[%s363] sm:$0xff]
        %v710 = vld [vmem:[%s363 + $0x8] sm:$0xff]
        %v711 = vld [vmem:[%s363 + $0x10] sm:$0xff]
        %v712 = vld [vmem:[%s363 + $0x18] sm:$0xff]
        %v713 = vld [vmem:[%s363 + $0x20] sm:$0xff]
        %v714 = vld [vmem:[%s363 + $0x28] sm:$0xff]
        %v715 = vld [vmem:[%s363 + $0x30] sm:$0xff]
        %v716 = vld [vmem:[%s363 + $0x38] sm:$0xff]
        %v717 = vld [vmem:[%s363 + $0x40] sm:$0xff]
        %v718 = vld [vmem:[%s363 + $0x48] sm:$0xff]
        %v719 = vld [vmem:[%s363 + $0x50] sm:$0xff]
        %v720 = vld [vmem:[%s363 + $0x58] sm:$0xff]
        %v721 = vld [vmem:[%s363 + $0x60] sm:$0xff]
        %v722 = vld [vmem:[%s363 + $0x68] sm:$0xff]
        %v723 = vld [vmem:[%s363 + $0x70] sm:$0xff]
        %v724 = vld [vmem:[%s363 + $0x78] sm:$0xff]
        %725 = vmatprep.subr.mxu0 0.0
        %726 = vmatpush1.msra.mxu0 %v709
        %727 = vmatprep.subr.mxu0 0.0
        %728 = vmatpush1.msra.mxu0 %v710
        %729 = vmatprep.subr.mxu0 0.0
        %730 = vmatpush1.msra.mxu0 %v711
        %731 = vmatprep.subr.mxu0 0.0
        %732 = vmatpush1.msra.mxu0 %v712
        %733 = vmatprep.subr.mxu0 0.0
        %734 = vmatpush1.msra.mxu0 %v713
        %735 = vmatprep.subr.mxu0 0.0
        %736 = vmatpush1.msra.mxu0 %v714
        %737 = vmatprep.subr.mxu0 0.0
        %738 = vmatpush1.msra.mxu0 %v715
        %739 = vmatprep.subr.mxu0 0.0
        %740 = vmatpush1.msra.mxu0 %v716
        %741 = vmatprep.subr.mxu0 0.0
        %742 = vmatpush1.msra.mxu0 %v717
        %743 = vmatprep.subr.mxu0 0.0
        %744 = vmatpush1.msra.mxu0 %v718
        %745 = vmatprep.subr.mxu0 0.0
        %746 = vmatpush1.msra.mxu0 %v719
        %747 = vmatprep.subr.mxu0 0.0
        %748 = vmatpush1.msra.mxu0 %v720
        %749 = vmatprep.subr.mxu0 0.0
        %750 = vmatpush1.msra.mxu0 %v721
        %751 = vmatprep.subr.mxu0 0.0
        %752 = vmatpush1.msra.mxu0 %v722
        %753 = vmatprep.subr.mxu0 0.0
        %754 = vmatpush1.msra.mxu0 %v723
        %755 = vmatprep.subr.mxu0 0.0
        %756 = vmatpush1.msra.mxu0 %v724
        %757 = vmatprep.subr.mxu0 0.0
        %758 = vmatpush1.msra.mxu0 0.0
        %759 = vmatprep.subr.mxu0 0.0
        %760 = vmatpush1.msra.mxu0 0.0
        %761 = vmatprep.subr.mxu0 0.0
        %762 = vmatpush1.msra.mxu0 0.0
        %763 = vmatprep.subr.mxu0 0.0
        %764 = vmatpush1.msra.mxu0 0.0
        %765 = vmatprep.subr.mxu0 0.0
        %766 = vmatpush1.msra.mxu0 0.0
        %767 = vmatprep.subr.mxu0 0.0
        %768 = vmatpush1.msra.mxu0 0.0
        %769 = vmatprep.subr.mxu0 0.0
        %770 = vmatpush1.msra.mxu0 0.0
        %771 = vmatprep.subr.mxu0 0.0
        %772 = vmatpush1.msra.mxu0 0.0
        %773 = vmatprep.subr.mxu0 0.0
        %774 = vmatpush1.msra.mxu0 0.0
        %775 = vmatprep.subr.mxu0 0.0
        %776 = vmatpush1.msra.mxu0 0.0
        %777 = vmatprep.subr.mxu0 0.0
        %778 = vmatpush1.msra.mxu0 0.0
        %779 = vmatprep.subr.mxu0 0.0
        %780 = vmatpush1.msra.mxu0 0.0
        %781 = vmatprep.subr.mxu0 0.0
        %782 = vmatpush1.msra.mxu0 0.0
        %783 = vmatprep.subr.mxu0 0.0
        %784 = vmatpush1.msra.mxu0 0.0
        %785 = vmatprep.subr.mxu0 0.0
        %786 = vmatpush1.msra.mxu0 0.0
        %787 = vmatprep.subr.mxu0 0.0
        %788 = vmatpush1.msra.mxu0 0.0
        %789 = vmatprep.mubr.f32.mxu0 0.0
        %790 = vmatmul.mubr.f32.gmra.mrb[0].mxu0 %v693
        %v791 = vpop.f32.mrb[0].mxu0
        %v792 = vadd.f32 0.0, %v791
        %v793 = vpop.f32.mrb[0].mxu0
        %794 = vmatprep.mubr.f32.mxu0 0.0
        %795 = vmatmul.mubr.f32.gmra.mrb[0].mxu0 %v694
        %v796 = vpop.f32.mrb[0].mxu0
        %v797 = vadd.f32 0.0, %v796
        %v798 = vpop.f32.mrb[0].mxu0
        %799 = vmatprep.mubr.f32.mxu0 0.0
        %800 = vmatmul.mubr.f32.gmra.mrb[0].mxu0 %v695
        %v801 = vpop.f32.mrb[0].mxu0
        %v802 = vadd.f32 0.0, %v801
        %v803 = vpop.f32.mrb[0].mxu0
        %804 = vmatprep.mubr.f32.mxu0 0.0
        %805 = vmatmul.mubr.f32.gmra.mrb[0].mxu0 %v696
        %v806 = vpop.f32.mrb[0].mxu0
        %v807 = vadd.f32 0.0, %v806
        %v808 = vpop.f32.mrb[0].mxu0
        %809 = vmatprep.mubr.f32.mxu0 0.0
        %810 = vmatmul.mubr.f32.gmra.mrb[0].mxu0 %v697
        %v811 = vpop.f32.mrb[0].mxu0
        %v812 = vadd.f32 0.0, %v811
        %v813 = vpop.f32.mrb[0].mxu0
        %814 = vmatprep.mubr.f32.mxu0 0.0
        %815 = vmatmul.mubr.f32.gmra.mrb[0].mxu0 %v698
        %v816 = vpop.f32.mrb[0].mxu0
        %v817 = vadd.f32 0.0, %v816
        %v818 = vpop.f32.mrb[0].mxu0
        %819 = vmatprep.mubr.f32.mxu0 0.0
        %820 = vmatmul.mubr.f32.gmra.mrb[0].mxu0 %v699
        %v821 = vpop.f32.mrb[0].mxu0
        %v822 = vadd.f32 0.0, %v821
        %v823 = vpop.f32.mrb[0].mxu0
        %824 = vmatprep.mubr.f32.mxu0 0.0
        %825 = vmatmul.mubr.f32.gmra.mrb[0].mxu0 %v700
        %v826 = vpop.f32.mrb[0].mxu0
        %v827 = vadd.f32 0.0, %v826
        %v828 = vpop.f32.mrb[0].mxu0
        %829 = vmatprep.mubr.f32.mxu0 0.0
        %830 = vmatmul.mubr.f32.gmra.mrb[0].mxu0 %v701
        %v831 = vpop.f32.mrb[0].mxu0
        %v832 = vadd.f32 0.0, %v831
        %v833 = vpop.f32.mrb[0].mxu0
        %834 = vmatprep.mubr.f32.mxu0 0.0
        %835 = vmatmul.mubr.f32.gmra.mrb[0].mxu0 %v702
        %v836 = vpop.f32.mrb[0].mxu0
        %v837 = vadd.f32 0.0, %v836
        %v838 = vpop.f32.mrb[0].mxu0
        %839 = vmatprep.mubr.f32.mxu0 0.0
        %840 = vmatmul.mubr.f32.gmra.mrb[0].mxu0 %v703
        %v841 = vpop.f32.mrb[0].mxu0
        %v842 = vadd.f32 0.0, %v841
        %v843 = vpop.f32.mrb[0].mxu0
        %844 = vmatprep.mubr.f32.mxu0 0.0
        %845 = vmatmul.mubr.f32.gmra.mrb[0].mxu0 %v704
        %v846 = vpop.f32.mrb[0].mxu0
        %v847 = vadd.f32 0.0, %v846
        %v848 = vpop.f32.mrb[0].mxu0
        %849 = vmatprep.mubr.f32.mxu0 0.0
        %850 = vmatmul.mubr.f32.gmra.mrb[0].mxu0 %v705
        %v851 = vpop.f32.mrb[0].mxu0
        %v852 = vadd.f32 0.0, %v851
        %v853 = vpop.f32.mrb[0].mxu0
        %854 = vmatprep.mubr.f32.mxu0 0.0
        %855 = vmatmul.mubr.f32.gmra.mrb[0].mxu0 %v706
        %v856 = vpop.f32.mrb[0].mxu0
        %v857 = vadd.f32 0.0, %v856
        %v858 = vpop.f32.mrb[0].mxu0
        %859 = vmatprep.mubr.f32.mxu0 0.0
        %860 = vmatmul.mubr.f32.gmra.mrb[0].mxu0 %v707
        %v861 = vpop.f32.mrb[0].mxu0
        %v862 = vadd.f32 0.0, %v861
        %v863 = vpop.f32.mrb[0].mxu0
        %864 = vmatprep.mubr.f32.mxu0 0.0
        %865 = vmatmul.mubr.f32.gmra.mrb[0].mxu0 %v708
        %v866 = vpop.f32.mrb[0].mxu0
        %v867 = vadd.f32 0.0, %v866
        %v868 = vpop.f32.mrb[0].mxu0
        %869 = vdwg.mxu0
        %v870 = vadd.f32 %v677, %v792
        %v871 = vadd.f32 %v678, %v797
        %v872 = vadd.f32 %v679, %v802
        %v873 = vadd.f32 %v680, %v807
        %v874 = vadd.f32 %v681, %v812
        %v875 = vadd.f32 %v682, %v817
        %v876 = vadd.f32 %v683, %v822
        %v877 = vadd.f32 %v684, %v827
        %v878 = vadd.f32 %v685, %v832
        %v879 = vadd.f32 %v686, %v837
        %v880 = vadd.f32 %v687, %v842
        %v881 = vadd.f32 %v688, %v847
        %v882 = vadd.f32 %v689, %v852
        %v883 = vadd.f32 %v690, %v857
        %v884 = vadd.f32 %v691, %v862
        %v885 = vadd.f32 %v692, %v867
        %886 = vst [vmem:[#allocation3] sm:$0xff] %v870
        %887 = vst [vmem:[#allocation3 + $0x8] sm:$0xff] %v871
        %888 = vst [vmem:[#allocation3 + $0x10] sm:$0xff] %v872
        %889 = vst [vmem:[#allocation3 + $0x18] sm:$0xff] %v873
        %890 = vst [vmem:[#allocation3 + $0x20] sm:$0xff] %v874
        %891 = vst [vmem:[#allocation3 + $0x28] sm:$0xff] %v875
        %892 = vst [vmem:[#allocation3 + $0x30] sm:$0xff] %v876
        %893 = vst [vmem:[#allocation3 + $0x38] sm:$0xff] %v877
        %894 = vst [vmem:[#allocation3 + $0x40] sm:$0xff] %v878
        %895 = vst [vmem:[#allocation3 + $0x48] sm:$0xff] %v879
        %896 = vst [vmem:[#allocation3 + $0x50] sm:$0xff] %v880
        %897 = vst [vmem:[#allocation3 + $0x58] sm:$0xff] %v881
        %898 = vst [vmem:[#allocation3 + $0x60] sm:$0xff] %v882
        %899 = vst [vmem:[#allocation3 + $0x68] sm:$0xff] %v883
        %900 = vst [vmem:[#allocation3 + $0x70] sm:$0xff] %v884
        %901 = vst [vmem:[#allocation3 + $0x78] sm:$0xff] %v885
        %p902 = scmp.eq.s32.totalorder %s35, 1
        // Predicated region
        $region61: #{tpu_custom_call.1} parent=39 // pred_check
          %p903 = pneg %p902
        $region62: #{tpu_custom_call.1} parent=39 // pred_check_branch
          %905 = sbr.rel (%p903) target = $region64
        $region63: #{tpu_custom_call.1} parent=39 // pred_region
          %v906 = vld [vmem:[#allocation2] sm:$0xff]
          %v907 = vld [vmem:[#allocation2 + $0x8] sm:$0xff]
          %v908 = vld [vmem:[#allocation2 + $0x10] sm:$0xff]
          %v909 = vld [vmem:[#allocation2 + $0x18] sm:$0xff]
          %v910 = vld [vmem:[#allocation2 + $0x20] sm:$0xff]
          %v911 = vld [vmem:[#allocation2 + $0x28] sm:$0xff]
          %v912 = vld [vmem:[#allocation2 + $0x30] sm:$0xff]
          %v913 = vld [vmem:[#allocation2 + $0x38] sm:$0xff]
          %v914 = vld [vmem:[#allocation2 + $0x40] sm:$0xff]
          %v915 = vld [vmem:[#allocation2 + $0x48] sm:$0xff]
          %v916 = vld [vmem:[#allocation2 + $0x50] sm:$0xff]
          %v917 = vld [vmem:[#allocation2 + $0x58] sm:$0xff]
          %v918 = vld [vmem:[#allocation2 + $0x60] sm:$0xff]
          %v919 = vld [vmem:[#allocation2 + $0x68] sm:$0xff]
          %v920 = vld [vmem:[#allocation2 + $0x70] sm:$0xff]
          %v921 = vld [vmem:[#allocation2 + $0x78] sm:$0xff]
          %v922 = vld [vmem:[#allocation3] sm:$0xff]
          %v923 = vld [vmem:[#allocation3 + $0x8] sm:$0xff]
          %v924 = vld [vmem:[#allocation3 + $0x10] sm:$0xff]
          %v925 = vld [vmem:[#allocation3 + $0x18] sm:$0xff]
          %v926 = vld [vmem:[#allocation3 + $0x20] sm:$0xff]
          %v927 = vld [vmem:[#allocation3 + $0x28] sm:$0xff]
          %v928 = vld [vmem:[#allocation3 + $0x30] sm:$0xff]
          %v929 = vld [vmem:[#allocation3 + $0x38] sm:$0xff]
          %v930 = vld [vmem:[#allocation3 + $0x40] sm:$0xff]
          %v931 = vld [vmem:[#allocation3 + $0x48] sm:$0xff]
          %v932 = vld [vmem:[#allocation3 + $0x50] sm:$0xff]
          %v933 = vld [vmem:[#allocation3 + $0x58] sm:$0xff]
          %v934 = vld [vmem:[#allocation3 + $0x60] sm:$0xff]
          %v935 = vld [vmem:[#allocation3 + $0x68] sm:$0xff]
          %v936 = vld [vmem:[#allocation3 + $0x70] sm:$0xff]
          %v937 = vld [vmem:[#allocation3 + $0x78] sm:$0xff]
          %v938 = vld [vmem:[%s414] sm:$0x1]
          %v939 = vadd.f32 %v906, %v922
          %v940 = vadd.f32 %v907, %v923
          %v941 = vadd.f32 %v908, %v924
          %v942 = vadd.f32 %v909, %v925
          %v943 = vadd.f32 %v910, %v926
          %v944 = vadd.f32 %v911, %v927
          %v945 = vadd.f32 %v912, %v928
          %v946 = vadd.f32 %v913, %v929
          %v947 = vadd.f32 %v914, %v930
          %v948 = vadd.f32 %v915, %v931
          %v949 = vadd.f32 %v916, %v932
          %v950 = vadd.f32 %v917, %v933
          %v951 = vadd.f32 %v918, %v934
          %v952 = vadd.f32 %v919, %v935
          %v953 = vadd.f32 %v920, %v936
          %v954 = vadd.f32 %v921, %v937
          %v955 = vmul.f32 %v922, 2.0
          %v956 = vmul.f32 %v923, 2.0
          %v957 = vmul.f32 %v924, 2.0
          %v958 = vmul.f32 %v925, 2.0
          %v959 = vmul.f32 %v926, 2.0
          %v960 = vmul.f32 %v927, 2.0
          %v961 = vmul.f32 %v928, 2.0
          %v962 = vmul.f32 %v929, 2.0
          %v963 = vmul.f32 %v930, 2.0
          %v964 = vmul.f32 %v931, 2.0
          %v965 = vmul.f32 %v932, 2.0
          %v966 = vmul.f32 %v933, 2.0
          %v967 = vmul.f32 %v934, 2.0
          %v968 = vmul.f32 %v935, 2.0
          %v969 = vmul.f32 %v936, 2.0
          %v970 = vmul.f32 %v937, 2.0
          %v971 = vadd.f32 %v906, %v955
          %v972 = vadd.f32 %v907, %v956
          %v973 = vadd.f32 %v908, %v957
          %v974 = vadd.f32 %v909, %v958
          %v975 = vadd.f32 %v910, %v959
          %v976 = vadd.f32 %v911, %v960
          %v977 = vadd.f32 %v912, %v961
          %v978 = vadd.f32 %v913, %v962
          %v979 = vadd.f32 %v914, %v963
          %v980 = vadd.f32 %v915, %v964
          %v981 = vadd.f32 %v916, %v965
          %v982 = vadd.f32 %v917, %v966
          %v983 = vadd.f32 %v918, %v967
          %v984 = vadd.f32 %v919, %v968
          %v985 = vadd.f32 %v920, %v969
          %v986 = vadd.f32 %v921, %v970
          %v988 = vlaneseq
          %v989 = vshrl.u32 %v988, 7
          %v990 = vsub.s32 0, %v989
          %v991 = vrot.slane %v938, %v990
          %v993 = vadd.f32 %v971, %v991
          %v994 = vadd.f32 %v972, %v991
          %v995 = vadd.f32 %v973, %v991
          %v996 = vadd.f32 %v974, %v991
          %v997 = vadd.f32 %v975, %v991
          %v998 = vadd.f32 %v976, %v991
          %v999 = vadd.f32 %v977, %v991
          %v1000 = vadd.f32 %v978, %v991
          %v1001 = vadd.f32 %v979, %v991
          %v1002 = vadd.f32 %v980, %v991
          %v1003 = vadd.f32 %v981, %v991
          %v1004 = vadd.f32 %v982, %v991
          %v1005 = vadd.f32 %v983, %v991
          %v1006 = vadd.f32 %v984, %v991
          %v1007 = vadd.f32 %v985, %v991
          %v1008 = vadd.f32 %v986, %v991
          %v1009 = vand.u32 2147483647, %v993
          %v1010 = vand.u32 2147483647, %v994
          %v1011 = vand.u32 2147483647, %v995
          %v1012 = vand.u32 2147483647, %v996
          %v1013 = vand.u32 2147483647, %v997
          %v1014 = vand.u32 2147483647, %v998
          %v1015 = vand.u32 2147483647, %v999
          %v1016 = vand.u32 2147483647, %v1000
          %v1017 = vand.u32 2147483647, %v1001
          %v1018 = vand.u32 2147483647, %v1002
          %v1019 = vand.u32 2147483647, %v1003
          %v1020 = vand.u32 2147483647, %v1004
          %v1021 = vand.u32 2147483647, %v1005
          %v1022 = vand.u32 2147483647, %v1006
          %v1023 = vand.u32 2147483647, %v1007
          %v1024 = vand.u32 2147483647, %v1008
          %v1025 = vmul.f32 %v1009, %v1009
          %v1026 = vmul.f32 %v1010, %v1010
          %v1027 = vmul.f32 %v1011, %v1011
          %v1028 = vmul.f32 %v1012, %v1012
          %v1029 = vmul.f32 %v1013, %v1013
          %v1030 = vmul.f32 %v1014, %v1014
          %v1031 = vmul.f32 %v1015, %v1015
          %v1032 = vmul.f32 %v1016, %v1016
          %v1033 = vmul.f32 %v1017, %v1017
          %v1034 = vmul.f32 %v1018, %v1018
          %v1035 = vmul.f32 %v1019, %v1019
          %v1036 = vmul.f32 %v1020, %v1020
          %v1037 = vmul.f32 %v1021, %v1021
          %v1038 = vmul.f32 %v1022, %v1022
          %v1039 = vmul.f32 %v1023, %v1023
          %v1040 = vmul.f32 %v1024, %v1024
          %v1041 = vadd.f32 %v906, %v991
          %v1042 = vadd.f32 %v907, %v991
          %v1043 = vadd.f32 %v908, %v991
          %v1044 = vadd.f32 %v909, %v991
          %v1045 = vadd.f32 %v910, %v991
          %v1046 = vadd.f32 %v911, %v991
          %v1047 = vadd.f32 %v912, %v991
          %v1048 = vadd.f32 %v913, %v991
          %v1049 = vadd.f32 %v914, %v991
          %v1050 = vadd.f32 %v915, %v991
          %v1051 = vadd.f32 %v916, %v991
          %v1052 = vadd.f32 %v917, %v991
          %v1053 = vadd.f32 %v918, %v991
          %v1054 = vadd.f32 %v919, %v991
          %v1055 = vadd.f32 %v920, %v991
          %v1056 = vadd.f32 %v921, %v991
          %v1057 = vadd.f32 %v1041, %v1009
          %v1058 = vadd.f32 %v1042, %v1010
          %v1059 = vadd.f32 %v1043, %v1011
          %v1060 = vadd.f32 %v1044, %v1012
          %v1061 = vadd.f32 %v1045, %v1013
          %v1062 = vadd.f32 %v1046, %v1014
          %v1063 = vadd.f32 %v1047, %v1015
          %v1064 = vadd.f32 %v1048, %v1016
          %v1065 = vadd.f32 %v1049, %v1017
          %v1066 = vadd.f32 %v1050, %v1018
          %v1067 = vadd.f32 %v1051, %v1019
          %v1068 = vadd.f32 %v1052, %v1020
          %v1069 = vadd.f32 %v1053, %v1021
          %v1070 = vadd.f32 %v1054, %v1022
          %v1071 = vadd.f32 %v1055, %v1023
          %v1072 = vadd.f32 %v1056, %v1024
          %v1073 = vadd.f32 %v1009, %v1025
          %v1074 = vadd.f32 %v1010, %v1026
          %v1075 = vadd.f32 %v1011, %v1027
          %v1076 = vadd.f32 %v1012, %v1028
          %v1077 = vadd.f32 %v1013, %v1029
          %v1078 = vadd.f32 %v1014, %v1030
          %v1079 = vadd.f32 %v1015, %v1031
          %v1080 = vadd.f32 %v1016, %v1032
          %v1081 = vadd.f32 %v1017, %v1033
          %v1082 = vadd.f32 %v1018, %v1034
          %v1083 = vadd.f32 %v1019, %v1035
          %v1084 = vadd.f32 %v1020, %v1036
          %v1085 = vadd.f32 %v1021, %v1037
          %v1086 = vadd.f32 %v1022, %v1038
          %v1087 = vadd.f32 %v1023, %v1039
          %v1088 = vadd.f32 %v1024, %v1040
          %v1089 = vmax.f32 %v1057, %v1073
          %v1090 = vmax.f32 %v1058, %v1074
          %v1091 = vmax.f32 %v1059, %v1075
          %v1092 = vmax.f32 %v1060, %v1076
          %v1093 = vmax.f32 %v1061, %v1077
          %v1094 = vmax.f32 %v1062, %v1078
          %v1095 = vmax.f32 %v1063, %v1079
          %v1096 = vmax.f32 %v1064, %v1080
          %v1097 = vmax.f32 %v1065, %v1081
          %v1098 = vmax.f32 %v1066, %v1082
          %v1099 = vmax.f32 %v1067, %v1083
          %v1100 = vmax.f32 %v1068, %v1084
          %v1101 = vmax.f32 %v1069, %v1085
          %v1102 = vmax.f32 %v1070, %v1086
          %v1103 = vmax.f32 %v1071, %v1087
          %v1104 = vmax.f32 %v1072, %v1088
          %v1105 = vsub.f32 %v1025, %v939
          %v1106 = vsub.f32 %v1026, %v940
          %v1107 = vsub.f32 %v1027, %v941
          %v1108 = vsub.f32 %v1028, %v942
          %v1109 = vsub.f32 %v1029, %v943
          %v1110 = vsub.f32 %v1030, %v944
          %v1111 = vsub.f32 %v1031, %v945
          %v1112 = vsub.f32 %v1032, %v946
          %v1113 = vsub.f32 %v1033, %v947
          %v1114 = vsub.f32 %v1034, %v948
          %v1115 = vsub.f32 %v1035, %v949
          %v1116 = vsub.f32 %v1036, %v950
          %v1117 = vsub.f32 %v1037, %v951
          %v1118 = vsub.f32 %v1038, %v952
          %v1119 = vsub.f32 %v1039, %v953
          %v1120 = vsub.f32 %v1040, %v954
          %v1121 = vmax.f32 %v1089, %v1105
          %v1122 = vmax.f32 %v1090, %v1106
          %v1123 = vmax.f32 %v1091, %v1107
          %v1124 = vmax.f32 %v1092, %v1108
          %v1125 = vmax.f32 %v1093, %v1109
          %v1126 = vmax.f32 %v1094, %v1110
          %v1127 = vmax.f32 %v1095, %v1111
          %v1128 = vmax.f32 %v1096, %v1112
          %v1129 = vmax.f32 %v1097, %v1113
          %v1130 = vmax.f32 %v1098, %v1114
          %v1131 = vmax.f32 %v1099, %v1115
          %v1132 = vmax.f32 %v1100, %v1116
          %v1133 = vmax.f32 %v1101, %v1117
          %v1134 = vmax.f32 %v1102, %v1118
          %v1135 = vmax.f32 %v1103, %v1119
          %v1136 = vmax.f32 %v1104, %v1120
          %1137 = vst [vmem:[%s407] sm:$0xff] %v1121
          %1138 = vst [vmem:[%s407 + $0x8] sm:$0xff] %v1122
          %1139 = vst [vmem:[%s407 + $0x10] sm:$0xff] %v1123
          %1140 = vst [vmem:[%s407 + $0x18] sm:$0xff] %v1124
          %1141 = vst [vmem:[%s407 + $0x20] sm:$0xff] %v1125
          %1142 = vst [vmem:[%s407 + $0x28] sm:$0xff] %v1126
          %1143 = vst [vmem:[%s407 + $0x30] sm:$0xff] %v1127
          %1144 = vst [vmem:[%s407 + $0x38] sm:$0xff] %v1128
          %1145 = vst [vmem:[%s407 + $0x40] sm:$0xff] %v1129
          %1146 = vst [vmem:[%s407 + $0x48] sm:$0xff] %v1130
          %1147 = vst [vmem:[%s407 + $0x50] sm:$0xff] %v1131
          %1148 = vst [vmem:[%s407 + $0x58] sm:$0xff] %v1132
          %1149 = vst [vmem:[%s407 + $0x60] sm:$0xff] %v1133
          %1150 = vst [vmem:[%s407 + $0x68] sm:$0xff] %v1134
          %1151 = vst [vmem:[%s407 + $0x70] sm:$0xff] %v1135
          %1152 = vst [vmem:[%s407 + $0x78] sm:$0xff] %v1136
        $region64: #{tpu_custom_call.1} parent=39 // pred_fallthru
          _
        %s1153 = sand.u32 %s195, 1
        %s1154 = scalar_lea.sflag [#allocation6], %s1153
        %s1155 = sand.u32 %s195, 1
        %s1156 = smul.addr %s1155, 128
        %s1157 = scalar_lea.vmem [#allocation12], %s1156
        // Predicated region
        $region65: #{tpu_custom_call.1} parent=39 // pred_check
          %p1158 = pneg %p205
        $region66: #{tpu_custom_call.1} parent=39 // pred_check_branch
          %1160 = sbr.rel (%p1158) target = $region68
        $region67: #{tpu_custom_call.1} parent=39 // pred_region
          %s1161 = smul.u32 16, %s33
          %s1163 = ssub.s32 2048, 2048
          %1164 = vsyncadd %s1154, %s1163
          %s1165 = smul.addr %s1161, 2
          %s1166 = sadd.s32 %s34, %s1165
          %s1167 = smul.addr %s1166, 128
          %s1168 = scalar_lea.hbm %s5, %s1167
          %s1169 = sshll.u32 %s1157, 4
          %s1170 = int_to_ptr.vmem [resolvable:$true] %s1169
          %1175 = dma.vmem_to_hbm [thread:$0]  %s1170, 2048, %s1168, %s1154, 128, 256, 8
        $region68: #{tpu_custom_call.1} parent=39 // pred_fallthru
          _
      $region40: #{tpu_custom_call.1} parent=5 // pred_fallthru
        _
      %p1176 = scmp.le.s32.totalorder 2, %s23
      // Predicated region
      $region69: #{tpu_custom_call.1} parent=5 // pred_check
        %p1177 = pneg %p1176
      $region70: #{tpu_custom_call.1} parent=5 // pred_check_branch
        %1179 = sbr.rel (%p1177) target = $region72
      $region71: #{tpu_custom_call.1} parent=5 // pred_region
        %s1180 = ssub.s32 %s23, 2
        // Predicated region
        $region73: #{tpu_custom_call.1} parent=71 // pred_check
          %p1181 = pneg %p211
        $region74: #{tpu_custom_call.1} parent=71 // pred_check_branch
          %1183 = sbr.rel (%p1181) target = $region76
        $region75: #{tpu_custom_call.1} parent=71 // pred_region
          %s1184 = sand.u32 %s196, 1
          %s1185 = scalar_lea.sflag [#allocation6], %s1184
          %s1186 = sand.u32 %s196, 1
          %s1187 = smul.addr %s1186, 128
          %s1188 = scalar_lea.vmem [#allocation12], %s1187
          %1189 = dma.done %s1185, 2048
        $region76: #{tpu_custom_call.1} parent=71 // pred_fallthru
          _
      $region72: #{tpu_custom_call.1} parent=5 // pred_fallthru
        _
    $region6: #{tpu_custom_call.1} parent=1 // loop_footer
      %s27 = sadd.s32 1, %s23
    $region7: #{tpu_custom_call.1} parent=1 // loop_footer_branch
      %22 = sbr.rel target = $region3
    $region8: #{tpu_custom_call.1} parent=1 // loop_exit
      _
    %1190 = vsyncpa [#allocation5], 1
    %s1191 = scalar_lea.sflag [#allocation5], 1
    %1192 = vsyncpa %s1191, 1
    %1193 = vsyncpa [#allocation8], 1
    %s1194 = scalar_lea.sflag [#allocation8], 1
    %1195 = vsyncpa %s1194, 1
    %1196 = vsyncpa [#allocation11], 1
    %s1197 = scalar_lea.sflag [#allocation11], 1
    %1198 = vsyncpa %s1197, 1
    %1199 = vsyncpa [#allocation6], 1
    %s1200 = scalar_lea.sflag [#allocation6], 1
    %1201 = vsyncpa %s1200, 1

</llo_original>
